<compile_context>
chip_gen: v6e
topology: v6e:2x2x1
jax: 0.10.0
libtpu: 0.0.40
codegen_flags: <defaults>
</compile_context>

<pallas_src>
import numpy as np
import jax
import jax.numpy as jnp
from jax.experimental import pallas as pl
from jax.experimental.pallas import tpu as pltpu


# ------------------------------- constants --------------------------------- #

NUM_NODES = 64
NUM_NETS = 32
MAX_PINS = 8
NUM_BINS = 16
XL, XH = 0.0, 128.0
YL, YH = 0.0, 128.0
TARGET_DENSITY = 0.9
DENSITY_WEIGHT = 1e-4


# ----------------------------- Pallas kernel ------------------------------- #

def _place_obj_kernel(scalars_ref, pxy_ref, mask_ref, netw_ref,
                      posx_ref, posy_ref, szx_ref, szy_ref,
                      dct_ref, invw_ref,
                      out_ref):
    """Fused PlaceObj.forward(): WA wirelength + density_weight * density energy.

    Outputs a single lane-dense (1, 128) row: lane 0 = objective, lane 1 = wirelength,
    lane 2 = density energy, rest zero.
    """
    inv_gamma = scalars_ref[0]
    bin_size_x = scalars_ref[1]
    bin_size_y = scalars_ref[2]
    xl = scalars_ref[3]
    yl = scalars_ref[4]
    inv_bin_area = scalars_ref[5]
    target_density = scalars_ref[6]
    density_weight = scalars_ref[7]

    # --------- weighted-average wirelength (x & y nets lane-packed) ---------- #
    # pxy: [max_pins, 2*num_nets] -- x-coordinate nets in lanes [0, num_nets),
    # y-coordinate nets in lanes [num_nets, 2*num_nets).  One pass does both.
    mask = mask_ref[...]          # [max_pins, 2*num_nets], 1.0 for valid pin slots
    netw = netw_ref[...]          # [1, 2*num_nets], net_mask_ignore_large_degrees
    neg_big = jnp.float32(-1e30)

    c = pxy_ref[...]
    # Reductions over the pin (sublane) axis; nets stay on the 128-wide lane axis.
    cmax = jnp.max(jnp.where(mask > 0, c, neg_big), axis=0, keepdims=True)
    cmin = -jnp.max(jnp.where(mask > 0, -c, neg_big), axis=0, keepdims=True)
    # Clamp exponent at 0: exact for valid pins (c <= cmax), and avoids
    # exp(+huge) -> Inf followed by Inf*0 = NaN for nets with zero valid pins.
    ep = jnp.exp(jnp.minimum((c - cmax) * inv_gamma, 0.0)) * mask
    en = jnp.exp(jnp.minimum((cmin - c) * inv_gamma, 0.0)) * mask
    sp = jnp.sum(ep, axis=0, keepdims=True)
    sn = jnp.sum(en, axis=0, keepdims=True)
    sxp = jnp.sum(c * ep, axis=0, keepdims=True)
    sxn = jnp.sum(c * en, axis=0, keepdims=True)
    # ep and en share the same pin mask, so the sp > 0 guard also covers sn.
    valid = sp > 0
    wa = jnp.where(
        valid,
        sxp / jnp.where(valid, sp, 1.0) - sxn / jnp.where(valid, sn, 1.0),
        0.0,
    )
    wl = jnp.sum(wa * netw, axis=(0, 1), keepdims=True)              # (1, 1)

    # ------------------- e-place density penalty (in-kernel) ------------------ #
    # Bin-overlap factors computed here (nodes lane-packed): ox[b, n] = x-overlap of
    # node n with bin b; likewise oy.  Cheap VPU work that hides under the matmul.
    nbins = invw_ref.shape[0]
    bins = jax.lax.broadcasted_iota(jnp.int32, (nbins, 1), 0).astype(jnp.float32)
    bx_lo = xl + bins * bin_size_x                                    # [nbins, 1]
    by_lo = yl + bins * bin_size_y
    posx = posx_ref[...]                                              # [1, num_nodes]
    posy = posy_ref[...]
    szx = szx_ref[...]
    szy = szy_ref[...]
    ox = jnp.maximum(
        jnp.minimum(posx + szx, bx_lo + bin_size_x) - jnp.maximum(posx, bx_lo), 0.0)
    oy = jnp.maximum(
        jnp.minimum(posy + szy, by_lo + bin_size_y) - jnp.maximum(posy, by_lo), 0.0)

    # density[bx, by] = sum_n ox[bx, n] * oy[by, n]   (bf16 MXU matmul, f32 accum)
    density = jnp.dot(ox.astype(jnp.bfloat16), oy.T.astype(jnp.bfloat16),
                      preferred_element_type=jnp.float32)
    rho = density * inv_bin_area - target_density
    dct = dct_ref[...]
    a = jnp.dot(jnp.dot(dct, rho, preferred_element_type=jnp.float32), dct.T,
                preferred_element_type=jnp.float32)
    # Poisson energy in the spectral domain: 0.5 * sum a_uv^2 / (wu^2 + wv^2)
    energy = 0.5 * jnp.sum(a * a * invw_ref[...], axis=(0, 1), keepdims=True)

    obj = wl + density_weight * energy

    # Lane-dense merged output: [obj, wl, energy, 0, ..., 0] on one 128-lane row.
    lane = jax.lax.broadcasted_iota(jnp.int32, (1, 128), 1)
    out_ref[...] = jnp.where(lane == 0, obj,
                   jnp.where(lane == 1, wl,
                   jnp.where(lane == 2, energy, 0.0)))


# ------------------------------- wrapper ----------------------------------- #

def fused_place_obj(scalars, pxy, mask, netw, posx, posy, szx, szy, dct, inv_w):
    def full_spec(a):
        nd = a.ndim
        return pl.BlockSpec(a.shape, lambda *_: (0,) * nd)

    tensors = (pxy, mask, netw, posx, posy, szx, szy, dct, inv_w)
    return pl.pallas_call(
        _place_obj_kernel,
        grid=(1,),
        in_specs=[pl.BlockSpec(memory_space=pltpu.MemorySpace.SMEM)]
                 + [full_spec(a) for a in tensors],
        out_specs=pl.BlockSpec((1, 128), lambda i: (0, 0)),
        out_shape=jax.ShapeDtypeStruct((1, 128), jnp.float32),
        compiler_params=pltpu.CompilerParams(dimension_semantics=("arbitrary",)),
    )(scalars, *tensors)


# ----------------------------- glue / setup -------------------------------- #

def dct2_matrix(n):
    u = np.arange(n)[:, None].astype(np.float64)
    b = np.arange(n)[None, :].astype(np.float64)
    c = np.sqrt(2.0 / n) * np.cos(np.pi * (b + 0.5) * u / n)
    c[0, :] *= 1.0 / np.sqrt(2.0)
    return jnp.asarray(c, dtype=jnp.float32)


def build_problem(key):
    bin_size_x = (XH - XL) / NUM_BINS
    bin_size_y = (YH - YL) / NUM_BINS
    # gamma = 10 * base_gamma = 10 * 4 * (bin_size_x + bin_size_y)
    gamma = 10.0 * 4.0 * (bin_size_x + bin_size_y)

    ks = jax.random.split(key, 8)
    node_size_x = jax.random.uniform(ks[0], (NUM_NODES,), jnp.float32, 2.0, 6.0)
    node_size_y = jax.random.uniform(ks[1], (NUM_NODES,), jnp.float32, 2.0, 6.0)
    pos_x = jax.random.uniform(ks[2], (NUM_NODES,), jnp.float32, XL, XH - 8.0)
    pos_y = jax.random.uniform(ks[3], (NUM_NODES,), jnp.float32, YL, YH - 8.0)
    pos = jnp.concatenate([pos_x, pos_y], axis=0)     # DREAMPlace flat pos [2*num_nodes]

    # Lane-packed net data: [max_pins, num_nets] (nets on the 128-wide lane axis).
    net2node_T = jax.random.randint(ks[4], (MAX_PINS, NUM_NETS), 0, NUM_NODES)
    degrees = jax.random.randint(ks[5], (NUM_NETS,), 2, MAX_PINS + 1)
    pin_mask_T = (jnp.arange(MAX_PINS)[:, None] < degrees[None, :]).astype(jnp.float32)
    pin_off_x_T = jax.random.uniform(ks[6], (MAX_PINS, NUM_NETS), jnp.float32, 0.0, 2.0)
    pin_off_y_T = jax.random.uniform(ks[7], (MAX_PINS, NUM_NETS), jnp.float32, 0.0, 2.0)
    net_weight = jnp.ones((1, NUM_NETS), jnp.float32)  # net_mask_ignore_large_degrees

    # x/y-packed variants for the fused kernel: x-nets in lanes [0,NUM_NETS),
    # y-nets in lanes [NUM_NETS, 2*NUM_NETS).  Gather indexes the flat pos vector.
    net2node_xy = jnp.concatenate([net2node_T, net2node_T + NUM_NODES], axis=1)
    pin_off_xy = jnp.concatenate([pin_off_x_T, pin_off_y_T], axis=1)
    pin_mask_xy = jnp.concatenate([pin_mask_T, pin_mask_T], axis=1)
    net_weight_xy = jnp.concatenate([net_weight, net_weight], axis=1)

    # spectral weights 1/(wu^2 + wv^2), (0,0) term dropped
    w = 2.0 * np.pi * np.arange(NUM_BINS) / NUM_BINS
    ww = w[:, None] ** 2 + w[None, :] ** 2
    inv_w = np.where(ww > 0, 1.0 / np.maximum(ww, 1e-12), 0.0)

    statics = dict(
        bin_size_x=bin_size_x, bin_size_y=bin_size_y, gamma=gamma,
        node_size_x=node_size_x, node_size_y=node_size_y,
        net2node_T=net2node_T, pin_mask_T=pin_mask_T,
        pin_off_x_T=pin_off_x_T, pin_off_y_T=pin_off_y_T, net_weight=net_weight,
        net2node_xy=net2node_xy, pin_off_xy=pin_off_xy,
        pin_mask_xy=pin_mask_xy, net_weight_xy=net_weight_xy,
        dct=dct2_matrix(NUM_BINS),
        inv_w=jnp.asarray(inv_w, dtype=jnp.float32),
    )
    return pos, statics


def place_obj_forward(pos, s):
    """Equivalent of PlaceObj.forward(): wirelength + density_weight * density."""
    pos_x, pos_y = pos[:NUM_NODES], pos[NUM_NODES:]

    # pin_pos_op: pin position = owning-cell position + pin offset.  Single tiny XLA
    # gather from the flat pos vector; masked slots keep raw values, kernel masks.
    pxy = pos[s["net2node_xy"]] + s["pin_off_xy"]      # [MAX_PINS, 2*NUM_NETS]

    scalars = jnp.asarray(
        [1.0 / s["gamma"], s["bin_size_x"], s["bin_size_y"], XL, YL,
         1.0 / (s["bin_size_x"] * s["bin_size_y"]), TARGET_DENSITY, DENSITY_WEIGHT],
        dtype=jnp.float32)

    out = fused_place_obj(
        scalars, pxy, s["pin_mask_xy"], s["net_weight_xy"],
        pos_x[None, :], pos_y[None, :],
        s["node_size_x"][None, :], s["node_size_y"][None, :],
        s["dct"], s["inv_w"])
    obj, wl, density = out[0, 0], out[0, 1], out[0, 2]
    return obj, (wl, density, pxy)


def reference_forward(pos, s):
    """Pure-JAX reference for correctness checking."""
    pos_x, pos_y = pos[:NUM_NODES], pos[NUM_NODES:]
    px = pos_x[s["net2node_T"]] + s["pin_off_x_T"]
    py = pos_y[s["net2node_T"]] + s["pin_off_y_T"]
    mask, netw, inv_g = s["pin_mask_T"], s["net_weight"], 1.0 / s["gamma"]

    def wa(c):
        cmax = jnp.max(jnp.where(mask > 0, c, -1e30), axis=0, keepdims=True)
        cmin = -jnp.max(jnp.where(mask > 0, -c, -1e30), axis=0, keepdims=True)
        ep = jnp.exp((c - cmax) * inv_g) * mask
        en = jnp.exp((cmin - c) * inv_g) * mask
        return (jnp.sum(c * ep, 0, keepdims=True) / jnp.sum(ep, 0, keepdims=True)
                - jnp.sum(c * en, 0, keepdims=True) / jnp.sum(en, 0, keepdims=True))

    wl = jnp.sum((wa(px) + wa(py)) * netw)

    bins = jnp.arange(NUM_BINS, dtype=jnp.float32)[:, None]
    bx_lo = XL + bins * s["bin_size_x"]
    by_lo = YL + bins * s["bin_size_y"]
    ox = jnp.maximum(
        jnp.minimum(pos_x[None, :] + s["node_size_x"][None, :], bx_lo + s["bin_size_x"])
        - jnp.maximum(pos_x[None, :], bx_lo), 0.0)
    oy = jnp.maximum(
        jnp.minimum(pos_y[None, :] + s["node_size_y"][None, :], by_lo + s["bin_size_y"])
        - jnp.maximum(pos_y[None, :], by_lo), 0.0)
    rho = (ox @ oy.T) / (s["bin_size_x"] * s["bin_size_y"]) - TARGET_DENSITY
    a = s["dct"] @ rho @ s["dct"].T
    density = 0.5 * jnp.sum(a * a * s["inv_w"])
    return wl + jnp.float32(DENSITY_WEIGHT) * density


if __name__ == "__main__":
    key = jax.random.PRNGKey(0)
    pos, statics = build_problem(key)

    obj, aux = place_obj_forward(pos, statics)
    obj = jax.block_until_ready(obj)

    ref = jax.block_until_ready(reference_forward(pos, statics))
    assert np.isfinite(np.asarray(obj)), obj
    assert np.allclose(np.asarray(obj), np.asarray(ref), rtol=1e-3, atol=1e-2), (obj, ref)

    print("KERNEL_OK")
</pallas_src>

<mosaic_0001>
module attributes {stable_mosaic.version = 11 : i64} {
  func.func @_place_obj_kernel(%arg0: i32, %arg1: memref<8xf32, #tpu.memory_space<smem>>, %arg2: memref<8x64xf32, #tpu.memory_space<vmem>>, %arg3: memref<8x64xf32, #tpu.memory_space<vmem>>, %arg4: memref<1x64xf32, #tpu.memory_space<vmem>>, %arg5: memref<1x64xf32, #tpu.memory_space<vmem>>, %arg6: memref<1x64xf32, #tpu.memory_space<vmem>>, %arg7: memref<1x64xf32, #tpu.memory_space<vmem>>, %arg8: memref<1x64xf32, #tpu.memory_space<vmem>>, %arg9: memref<16x16xf32, #tpu.memory_space<vmem>>, %arg10: memref<16x16xf32, #tpu.memory_space<vmem>>, %arg11: memref<1x128xf32, #tpu.memory_space<vmem>>) attributes {dimension_semantics = [#tpu.dimension_semantics<arbitrary>], iteration_bounds = array<i64: 1>, scalar_prefetch = 0 : i64, scratch_operands = 0 : i64, tpu.core_type = #tpu.core_type<tc>, window_params = [{transform_indices = @transform_0, window_bounds = array<i64: 8>}, {pipeline_mode = #tpu.pipeline_mode<synchronous>, transform_indices = @transform_1, window_bounds = array<i64: 8, 64>}, {pipeline_mode = #tpu.pipeline_mode<synchronous>, transform_indices = @transform_2, window_bounds = array<i64: 8, 64>}, {pipeline_mode = #tpu.pipeline_mode<synchronous>, transform_indices = @transform_3, window_bounds = array<i64: 1, 64>}, {pipeline_mode = #tpu.pipeline_mode<synchronous>, transform_indices = @transform_4, window_bounds = array<i64: 1, 64>}, {pipeline_mode = #tpu.pipeline_mode<synchronous>, transform_indices = @transform_5, window_bounds = array<i64: 1, 64>}, {pipeline_mode = #tpu.pipeline_mode<synchronous>, transform_indices = @transform_6, window_bounds = array<i64: 1, 64>}, {pipeline_mode = #tpu.pipeline_mode<synchronous>, transform_indices = @transform_7, window_bounds = array<i64: 1, 64>}, {pipeline_mode = #tpu.pipeline_mode<synchronous>, transform_indices = @transform_8, window_bounds = array<i64: 16, 16>}, {pipeline_mode = #tpu.pipeline_mode<synchronous>, transform_indices = @transform_9, window_bounds = array<i64: 16, 16>}, {pipeline_mode = #tpu.pipeline_mode<synchronous>, transform_indices = @transform_10, window_bounds = array<i64: 1, 128>}]} {
    %c0 = arith.constant 0 : index
    %0 = memref.load %arg1[%c0] : memref<8xf32, #tpu.memory_space<smem>>
    %c1 = arith.constant 1 : index
    %1 = memref.load %arg1[%c1] : memref<8xf32, #tpu.memory_space<smem>>
    %c2 = arith.constant 2 : index
    %2 = memref.load %arg1[%c2] : memref<8xf32, #tpu.memory_space<smem>>
    %c3 = arith.constant 3 : index
    %3 = memref.load %arg1[%c3] : memref<8xf32, #tpu.memory_space<smem>>
    %c4 = arith.constant 4 : index
    %4 = memref.load %arg1[%c4] : memref<8xf32, #tpu.memory_space<smem>>
    %c5 = arith.constant 5 : index
    %5 = memref.load %arg1[%c5] : memref<8xf32, #tpu.memory_space<smem>>
    %c6 = arith.constant 6 : index
    %6 = memref.load %arg1[%c6] : memref<8xf32, #tpu.memory_space<smem>>
    %c7 = arith.constant 7 : index
    %7 = memref.load %arg1[%c7] : memref<8xf32, #tpu.memory_space<smem>>
    %c0_0 = arith.constant 0 : index
    %c0_1 = arith.constant 0 : index
    %8 = vector.load %arg3[%c0_0, %c0_1] : memref<8x64xf32, #tpu.memory_space<vmem>>, vector<8x64xf32>
    %c0_2 = arith.constant 0 : index
    %c0_3 = arith.constant 0 : index
    %9 = vector.load %arg4[%c0_2, %c0_3] : memref<1x64xf32, #tpu.memory_space<vmem>>, vector<1x64xf32>
    %c0_4 = arith.constant 0 : index
    %c0_5 = arith.constant 0 : index
    %10 = vector.load %arg2[%c0_4, %c0_5] : memref<8x64xf32, #tpu.memory_space<vmem>>, vector<8x64xf32>
    %cst = arith.constant 0.000000e+00 : f32
    %11 = vector.broadcast %cst : f32 to vector<8x64xf32>
    %12 = arith.cmpf ogt, %8, %11 : vector<8x64xf32>
    %cst_6 = arith.constant -1.000000e+30 : f32
    %13 = vector.broadcast %cst_6 : f32 to vector<8x64xf32>
    %14 = arith.select %12, %10, %13 : vector<8x64xi1>, vector<8x64xf32>
    %cst_7 = arith.constant dense<0xFF800000> : vector<64xf32>
    %15 = vector.multi_reduction <maximumf>, %14, %cst_7 [0] : vector<8x64xf32> to vector<64xf32>
    %16 = vector.shape_cast %15 : vector<64xf32> to vector<1x64xf32>
    %cst_8 = arith.constant 0.000000e+00 : f32
    %17 = vector.broadcast %cst_8 : f32 to vector<8x64xf32>
    %18 = arith.cmpf ogt, %8, %17 : vector<8x64xf32>
    %cst_9 = arith.constant 0.000000e+00 : f32
    %19 = vector.broadcast %cst_9 : f32 to vector<8x64xf32>
    %20 = arith.subf %19, %10 : vector<8x64xf32>
    %cst_10 = arith.constant -1.000000e+30 : f32
    %21 = vector.broadcast %cst_10 : f32 to vector<8x64xf32>
    %22 = arith.select %18, %20, %21 : vector<8x64xi1>, vector<8x64xf32>
    %cst_11 = arith.constant dense<0xFF800000> : vector<64xf32>
    %23 = vector.multi_reduction <maximumf>, %22, %cst_11 [0] : vector<8x64xf32> to vector<64xf32>
    %24 = vector.shape_cast %23 : vector<64xf32> to vector<1x64xf32>
    %cst_12 = arith.constant 0.000000e+00 : f32
    %25 = vector.broadcast %cst_12 : f32 to vector<1x64xf32>
    %26 = arith.subf %25, %24 : vector<1x64xf32>
    %27 = vector.broadcast %16 : vector<1x64xf32> to vector<8x64xf32>
    %28 = arith.subf %10, %27 : vector<8x64xf32>
    %29 = vector.broadcast %0 : f32 to vector<8x64xf32>
    %30 = arith.mulf %28, %29 : vector<8x64xf32>
    %cst_13 = arith.constant 0.000000e+00 : f32
    %31 = vector.broadcast %cst_13 : f32 to vector<8x64xf32>
    %32 = arith.minimumf %30, %31 : vector<8x64xf32>
    %33 = math.exp %32 : vector<8x64xf32>
    %34 = arith.mulf %33, %8 : vector<8x64xf32>
    %35 = vector.broadcast %26 : vector<1x64xf32> to vector<8x64xf32>
    %36 = arith.subf %35, %10 : vector<8x64xf32>
    %37 = vector.broadcast %0 : f32 to vector<8x64xf32>
    %38 = arith.mulf %36, %37 : vector<8x64xf32>
    %cst_14 = arith.constant 0.000000e+00 : f32
    %39 = vector.broadcast %cst_14 : f32 to vector<8x64xf32>
    %40 = arith.minimumf %38, %39 : vector<8x64xf32>
    %41 = math.exp %40 : vector<8x64xf32>
    %42 = arith.mulf %41, %8 : vector<8x64xf32>
    %cst_15 = arith.constant dense<0.000000e+00> : vector<64xf32>
    %43 = vector.multi_reduction <add>, %34, %cst_15 [0] : vector<8x64xf32> to vector<64xf32>
    %44 = vector.shape_cast %43 : vector<64xf32> to vector<1x64xf32>
    %cst_16 = arith.constant dense<0.000000e+00> : vector<64xf32>
    %45 = vector.multi_reduction <add>, %42, %cst_16 [0] : vector<8x64xf32> to vector<64xf32>
    %46 = vector.shape_cast %45 : vector<64xf32> to vector<1x64xf32>
    %47 = arith.mulf %10, %34 : vector<8x64xf32>
    %cst_17 = arith.constant dense<0.000000e+00> : vector<64xf32>
    %48 = vector.multi_reduction <add>, %47, %cst_17 [0] : vector<8x64xf32> to vector<64xf32>
    %49 = vector.shape_cast %48 : vector<64xf32> to vector<1x64xf32>
    %50 = arith.mulf %10, %42 : vector<8x64xf32>
    %cst_18 = arith.constant dense<0.000000e+00> : vector<64xf32>
    %51 = vector.multi_reduction <add>, %50, %cst_18 [0] : vector<8x64xf32> to vector<64xf32>
    %52 = vector.shape_cast %51 : vector<64xf32> to vector<1x64xf32>
    %cst_19 = arith.constant 0.000000e+00 : f32
    %53 = vector.broadcast %cst_19 : f32 to vector<1x64xf32>
    %54 = arith.cmpf ogt, %44, %53 : vector<1x64xf32>
    %cst_20 = arith.constant 1.000000e+00 : f32
    %55 = vector.broadcast %cst_20 : f32 to vector<1x64xf32>
    %56 = arith.select %54, %44, %55 : vector<1x64xi1>, vector<1x64xf32>
    %57 = arith.divf %49, %56 : vector<1x64xf32>
    %cst_21 = arith.constant 1.000000e+00 : f32
    %58 = vector.broadcast %cst_21 : f32 to vector<1x64xf32>
    %59 = arith.select %54, %46, %58 : vector<1x64xi1>, vector<1x64xf32>
    %60 = arith.divf %52, %59 : vector<1x64xf32>
    %61 = arith.subf %57, %60 : vector<1x64xf32>
    %cst_22 = arith.constant 0.000000e+00 : f32
    %62 = vector.broadcast %cst_22 : f32 to vector<1x64xf32>
    %63 = arith.select %54, %61, %62 : vector<1x64xi1>, vector<1x64xf32>
    %64 = arith.mulf %63, %9 : vector<1x64xf32>
    %65 = vector.shape_cast %64 : vector<1x64xf32> to vector<1x1x64xf32>
    %cst_23 = arith.constant dense<0.000000e+00> : vector<1xf32>
    %66 = vector.multi_reduction <add>, %65, %cst_23 [1, 2] : vector<1x1x64xf32> to vector<1xf32>
    %67 = vector.shape_cast %66 : vector<1xf32> to vector<1x1x1xf32>
    %68 = vector.extract %67[0, 0, 0] : f32 from vector<1x1x1xf32>
    %69 = vector.broadcast %68 : f32 to vector<1x1xf32>
    %70 = tpu.iota {dimensions = array<i32: 0>} : vector<16x1xi32>
    %71 = arith.sitofp %70 : vector<16x1xi32> to vector<16x1xf32>
    %72 = vector.broadcast %1 : f32 to vector<16x1xf32>
    %73 = arith.mulf %71, %72 : vector<16x1xf32>
    %74 = vector.broadcast %3 : f32 to vector<16x1xf32>
    %75 = arith.addf %74, %73 : vector<16x1xf32>
    %76 = vector.broadcast %2 : f32 to vector<16x1xf32>
    %77 = arith.mulf %71, %76 : vector<16x1xf32>
    %78 = vector.broadcast %4 : f32 to vector<16x1xf32>
    %79 = arith.addf %78, %77 : vector<16x1xf32>
    %c0_24 = arith.constant 0 : index
    %c0_25 = arith.constant 0 : index
    %80 = vector.load %arg5[%c0_24, %c0_25] : memref<1x64xf32, #tpu.memory_space<vmem>>, vector<1x64xf32>
    %c0_26 = arith.constant 0 : index
    %c0_27 = arith.constant 0 : index
    %81 = vector.load %arg6[%c0_26, %c0_27] : memref<1x64xf32, #tpu.memory_space<vmem>>, vector<1x64xf32>
    %c0_28 = arith.constant 0 : index
    %c0_29 = arith.constant 0 : index
    %82 = vector.load %arg7[%c0_28, %c0_29] : memref<1x64xf32, #tpu.memory_space<vmem>>, vector<1x64xf32>
    %c0_30 = arith.constant 0 : index
    %c0_31 = arith.constant 0 : index
    %83 = vector.load %arg8[%c0_30, %c0_31] : memref<1x64xf32, #tpu.memory_space<vmem>>, vector<1x64xf32>
    %84 = arith.addf %80, %82 : vector<1x64xf32>
    %85 = vector.broadcast %1 : f32 to vector<16x1xf32>
    %86 = arith.addf %75, %85 : vector<16x1xf32>
    %87 = vector.broadcast %84 : vector<1x64xf32> to vector<16x64xf32>
    %88 = vector.broadcast %86 : vector<16x1xf32> to vector<16x64xf32>
    %89 = arith.minimumf %87, %88 : vector<16x64xf32>
    %90 = vector.broadcast %80 : vector<1x64xf32> to vector<16x64xf32>
    %91 = vector.broadcast %75 : vector<16x1xf32> to vector<16x64xf32>
    %92 = arith.maximumf %90, %91 : vector<16x64xf32>
    %93 = arith.subf %89, %92 : vector<16x64xf32>
    %cst_32 = arith.constant 0.000000e+00 : f32
    %94 = vector.broadcast %cst_32 : f32 to vector<16x64xf32>
    %95 = arith.maximumf %93, %94 : vector<16x64xf32>
    %96 = arith.addf %81, %83 : vector<1x64xf32>
    %97 = vector.broadcast %2 : f32 to vector<16x1xf32>
    %98 = arith.addf %79, %97 : vector<16x1xf32>
    %99 = vector.broadcast %96 : vector<1x64xf32> to vector<16x64xf32>
    %100 = vector.broadcast %98 : vector<16x1xf32> to vector<16x64xf32>
    %101 = arith.minimumf %99, %100 : vector<16x64xf32>
    %102 = vector.broadcast %81 : vector<1x64xf32> to vector<16x64xf32>
    %103 = vector.broadcast %79 : vector<16x1xf32> to vector<16x64xf32>
    %104 = arith.maximumf %102, %103 : vector<16x64xf32>
    %105 = arith.subf %101, %104 : vector<16x64xf32>
    %cst_33 = arith.constant 0.000000e+00 : f32
    %106 = vector.broadcast %cst_33 : f32 to vector<16x64xf32>
    %107 = arith.maximumf %105, %106 : vector<16x64xf32>
    %108 = arith.truncf %95 : vector<16x64xf32> to vector<16x64xbf16>
    %109 = tpu.transpose %107, [1, 0] : vector<16x64xf32> -> vector<64x16xf32>
    %110 = arith.truncf %109 : vector<64x16xf32> to vector<64x16xbf16>
    %cst_34 = arith.constant dense<0.000000e+00> : vector<16x16xf32>
    %111 = tpu.matmul %108, %110, %cst_34 {dimension_numbers = #tpu.dot_dimension_numbers<[1], [0], [0], [1], [0, 0, 1, 1], [], []>} : vector<16x64xbf16>, vector<64x16xbf16>, vector<16x16xf32> -> vector<16x16xf32>
    %112 = vector.broadcast %5 : f32 to vector<16x16xf32>
    %113 = arith.mulf %111, %112 : vector<16x16xf32>
    %114 = vector.broadcast %6 : f32 to vector<16x16xf32>
    %115 = arith.subf %113, %114 : vector<16x16xf32>
    %c0_35 = arith.constant 0 : index
    %c0_36 = arith.constant 0 : index
    %116 = vector.load %arg9[%c0_35, %c0_36] : memref<16x16xf32, #tpu.memory_space<vmem>>, vector<16x16xf32>
    %cst_37 = arith.constant dense<0.000000e+00> : vector<16x16xf32>
    %117 = tpu.matmul %116, %115, %cst_37 {dimension_numbers = #tpu.dot_dimension_numbers<[1], [0], [0], [1], [0, 0, 1, 1], [], []>} : vector<16x16xf32>, vector<16x16xf32>, vector<16x16xf32> -> vector<16x16xf32>
    %118 = tpu.transpose %116, [1, 0] : vector<16x16xf32> -> vector<16x16xf32>
    %cst_38 = arith.constant dense<0.000000e+00> : vector<16x16xf32>
    %119 = tpu.matmul %117, %118, %cst_38 {dimension_numbers = #tpu.dot_dimension_numbers<[1], [0], [0], [1], [0, 0, 1, 1], [], []>} : vector<16x16xf32>, vector<16x16xf32>, vector<16x16xf32> -> vector<16x16xf32>
    %120 = arith.mulf %119, %119 : vector<16x16xf32>
    %c0_39 = arith.constant 0 : index
    %c0_40 = arith.constant 0 : index
    %121 = vector.load %arg10[%c0_39, %c0_40] : memref<16x16xf32, #tpu.memory_space<vmem>>, vector<16x16xf32>
    %122 = arith.mulf %120, %121 : vector<16x16xf32>
    %123 = vector.shape_cast %122 : vector<16x16xf32> to vector<1x16x16xf32>
    %cst_41 = arith.constant dense<0.000000e+00> : vector<1xf32>
    %124 = vector.multi_reduction <add>, %123, %cst_41 [1, 2] : vector<1x16x16xf32> to vector<1xf32>
    %125 = vector.shape_cast %124 : vector<1xf32> to vector<1x1x1xf32>
    %126 = vector.extract %125[0, 0, 0] : f32 from vector<1x1x1xf32>
    %127 = vector.broadcast %126 : f32 to vector<1x1xf32>
    %cst_42 = arith.constant 5.000000e-01 : f32
    %128 = vector.broadcast %cst_42 : f32 to vector<1x1xf32>
    %129 = arith.mulf %128, %127 : vector<1x1xf32>
    %130 = vector.broadcast %7 : f32 to vector<1x1xf32>
    %131 = arith.mulf %130, %129 : vector<1x1xf32>
    %132 = arith.addf %69, %131 : vector<1x1xf32>
    %133 = tpu.iota {dimensions = array<i32: 1>} : vector<1x128xi32>
    %c0_i32 = arith.constant 0 : i32
    %134 = vector.broadcast %c0_i32 : i32 to vector<1x128xi32>
    %135 = arith.cmpi eq, %133, %134 : vector<1x128xi32>
    %c1_i32 = arith.constant 1 : i32
    %136 = vector.broadcast %c1_i32 : i32 to vector<1x128xi32>
    %137 = arith.cmpi eq, %133, %136 : vector<1x128xi32>
    %c2_i32 = arith.constant 2 : i32
    %138 = vector.broadcast %c2_i32 : i32 to vector<1x128xi32>
    %139 = arith.cmpi eq, %133, %138 : vector<1x128xi32>
    %cst_43 = arith.constant 0.000000e+00 : f32
    %140 = vector.shape_cast %129 : vector<1x1xf32> to vector<1x1xf32>
    %141 = vector.broadcast %140 : vector<1x1xf32> to vector<1x128xf32>
    %142 = vector.broadcast %cst_43 : f32 to vector<1x128xf32>
    %143 = arith.select %139, %141, %142 : vector<1x128xi1>, vector<1x128xf32>
    %144 = vector.shape_cast %69 : vector<1x1xf32> to vector<1x1xf32>
    %145 = vector.broadcast %144 : vector<1x1xf32> to vector<1x128xf32>
    %146 = arith.select %137, %145, %143 : vector<1x128xi1>, vector<1x128xf32>
    %147 = vector.shape_cast %132 : vector<1x1xf32> to vector<1x1xf32>
    %148 = vector.broadcast %147 : vector<1x1xf32> to vector<1x128xf32>
    %149 = arith.select %135, %148, %146 : vector<1x128xi1>, vector<1x128xf32>
    %c0_44 = arith.constant 0 : index
    %c0_45 = arith.constant 0 : index
    %150 = vector.load %arg11[%c0_44, %c0_45] : memref<1x128xf32, #tpu.memory_space<vmem>>, vector<1x128xf32>
    tpu.vector_store %arg11[%c0_44, %c0_45], %149 {strides = array<i32>} : memref<1x128xf32, #tpu.memory_space<vmem>>, vector<1x128xf32>,
    return
  }
  func.func @transform_0(%arg0: i32) -> i32 {
    %c0_i32 = arith.constant 0 : i32
    %c0_i32_0 = arith.constant 0 : i32
    return %c0_i32 : i32
  }
  func.func @transform_1(%arg0: i32) -> (i32, i32) {
    %c0_i32 = arith.constant 0 : i32
    %c0_i32_0 = arith.constant 0 : i32
    %c0_i32_1 = arith.constant 0 : i32
    return %c0_i32, %c0_i32_0 : i32, i32
  }
  func.func @transform_2(%arg0: i32) -> (i32, i32) {
    %c0_i32 = arith.constant 0 : i32
    %c0_i32_0 = arith.constant 0 : i32
    %c0_i32_1 = arith.constant 0 : i32
    return %c0_i32, %c0_i32_0 : i32, i32
  }
  func.func @transform_3(%arg0: i32) -> (i32, i32) {
    %c0_i32 = arith.constant 0 : i32
    %c0_i32_0 = arith.constant 0 : i32
    %c0_i32_1 = arith.constant 0 : i32
    return %c0_i32, %c0_i32_0 : i32, i32
  }
  func.func @transform_4(%arg0: i32) -> (i32, i32) {
    %c0_i32 = arith.constant 0 : i32
    %c0_i32_0 = arith.constant 0 : i32
    %c0_i32_1 = arith.constant 0 : i32
    return %c0_i32, %c0_i32_0 : i32, i32
  }
  func.func @transform_5(%arg0: i32) -> (i32, i32) {
    %c0_i32 = arith.constant 0 : i32
    %c0_i32_0 = arith.constant 0 : i32
    %c0_i32_1 = arith.constant 0 : i32
    return %c0_i32, %c0_i32_0 : i32, i32
  }
  func.func @transform_6(%arg0: i32) -> (i32, i32) {
    %c0_i32 = arith.constant 0 : i32
    %c0_i32_0 = arith.constant 0 : i32
    %c0_i32_1 = arith.constant 0 : i32
    return %c0_i32, %c0_i32_0 : i32, i32
  }
  func.func @transform_7(%arg0: i32) -> (i32, i32) {
    %c0_i32 = arith.constant 0 : i32
    %c0_i32_0 = arith.constant 0 : i32
    %c0_i32_1 = arith.constant 0 : i32
    return %c0_i32, %c0_i32_0 : i32, i32
  }
  func.func @transform_8(%arg0: i32) -> (i32, i32) {
    %c0_i32 = arith.constant 0 : i32
    %c0_i32_0 = arith.constant 0 : i32
    %c0_i32_1 = arith.constant 0 : i32
    return %c0_i32, %c0_i32_0 : i32, i32
  }
  func.func @transform_9(%arg0: i32) -> (i32, i32) {
    %c0_i32 = arith.constant 0 : i32
    %c0_i32_0 = arith.constant 0 : i32
    %c0_i32_1 = arith.constant 0 : i32
    return %c0_i32, %c0_i32_0 : i32, i32
  }
  func.func @transform_10(%arg0: i32) -> (i32, i32) {
    %c0_i32 = arith.constant 0 : i32
    %c0_i32_0 = arith.constant 0 : i32
    %c0_i32_1 = arith.constant 0 : i32
    return %c0_i32, %c0_i32_0 : i32, i32
  }
}

</mosaic_0001>

<llo_original>
// kernel: tpu_custom_call.1
$region0: #{tpu_custom_call.1}
  #allocation0 [shape = 'u32[]', space=smem, size = 0x4, offset = 0x4, fixed_abs, tag = 'smem constant byte address 0x4 - core index']
  #allocation1 [shape = 'u32[144,128]{1,0:T(1,128)}', space=vmem, size = 0x12000, scoped, tag = 'internal scratch']
  %s0 = inlined_call_operand.hbm [shape: f32[8], index: 0, kind: input, shape index: {}]
  %s1 = inlined_call_operand.hbm [shape: f32[8,64], index: 1, kind: input, shape index: {}]
  %s2 = inlined_call_operand.hbm [shape: f32[8,64], index: 2, kind: input, shape index: {}]
  %s3 = inlined_call_operand.hbm [shape: f32[1,64], index: 3, kind: input, shape index: {}]
  %s4 = inlined_call_operand.hbm [shape: f32[1,64], index: 4, kind: input, shape index: {}]
  %s5 = inlined_call_operand.hbm [shape: f32[1,64], index: 5, kind: input, shape index: {}]
  %s6 = inlined_call_operand.hbm [shape: f32[1,64], index: 6, kind: input, shape index: {}]
  %s7 = inlined_call_operand.hbm [shape: f32[1,64], index: 7, kind: input, shape index: {}]
  %s8 = inlined_call_operand.hbm [shape: f32[16,16], index: 8, kind: input, shape index: {}]
  %s9 = inlined_call_operand.vmem [shape: f32[16,16], index: 9, kind: input, shape index: {}]
  %s10 = inlined_call_operand.hbm [shape: f32[1,128], index: 10, kind: output, shape index: {}]
  %s11 = sld [smem:[#allocation0]]
  $region86: #{tpu_custom_call.1} parent=0
    _
  %s13 = ssub.s32 1, %s11
  %s14 = scalar_select 0, %s13, %s11
  $region1: #{tpu_custom_call.1} parent=0
    #allocation2 [shape = 'u8[512]{0}', space=smem, size = 0x200, scoped, tag = 'input window, operand 0, single buffered']
    #allocation3 [shape = 's32[1]{0}', space=sflag, size = 0x4, scoped, tag = 'scoped memory for tpu_custom_call.1']
    #allocation4 [shape = 's32[1]{0}', space=sflag, size = 0x4, scoped, tag = 'scoped memory for tpu_custom_call.1']
    #allocation5 [shape = 's32[1]{0}', space=sflag, size = 0x4, scoped, tag = 'scoped memory for tpu_custom_call.1']
    #allocation6 [shape = 'u8[4096]{0}', space=vmem, size = 0x1000, scoped, tag = 'input window, operand 1, single buffered']
    #allocation7 [shape = 'u8[4096]{0}', space=vmem, size = 0x1000, scoped, tag = 'input window, operand 2, single buffered']
    #allocation8 [shape = 's32[1]{0}', space=sflag, size = 0x4, scoped, tag = 'scoped memory for tpu_custom_call.1']
    #allocation9 [shape = 'u8[512]{0}', space=vmem, size = 0x400, scoped, tag = 'input window, operand 3, single buffered']
    #allocation10 [shape = 'u8[512]{0}', space=vmem, size = 0x400, scoped, tag = 'input window, operand 4, single buffered']
    #allocation11 [shape = 's32[1]{0}', space=sflag, size = 0x4, scoped, tag = 'scoped memory for tpu_custom_call.1']
    #allocation12 [shape = 'u8[512]{0}', space=vmem, size = 0x400, scoped, tag = 'input window, operand 5, single buffered']
    #allocation13 [shape = 'u8[512]{0}', space=vmem, size = 0x400, scoped, tag = 'input window, operand 6, single buffered']
    #allocation14 [shape = 's32[1]{0}', space=sflag, size = 0x4, scoped, tag = 'scoped memory for tpu_custom_call.1']
    #allocation15 [shape = 'u8[512]{0}', space=vmem, size = 0x400, scoped, tag = 'input window, operand 7, single buffered']
    #allocation16 [shape = 'u8[8192]{0}', space=vmem, size = 0x2000, scoped, tag = 'input window, operand 8, single buffered']
    #allocation17 [shape = 's32[1]{0}', space=sflag, size = 0x4, scoped, tag = 'scoped memory for tpu_custom_call.1']
    #allocation18 [shape = 'u8[512]{0}', space=vmem, size = 0x400, scoped, tag = 'output window, operand 0, single buffered']
    %15 = vsyncpa [#allocation5], 0
    %16 = vsyncpa [#allocation3], 0
    %17 = vsyncpa [#allocation8], 0
    %18 = vsyncpa [#allocation11], 0
    %19 = vsyncpa [#allocation14], 0
    %20 = vsyncpa [#allocation17], 0
    %21 = vsyncpa [#allocation4], 0
    // Predicated region
    $region2: #{tpu_custom_call.1} parent=1 // pred_check
      _
    $region3: #{tpu_custom_call.1} parent=1 // pred_check_branch
      %23 = sbr.rel (0) target = $region5
    $region4: #{tpu_custom_call.1} parent=1 // pred_region
      %s25 = ssub.s32 16, 16
      %26 = vsyncadd [#allocation5], %s25
      %29 = dma.hbm_to_smem %s0, 16, [#allocation2], [#allocation5]
    $region5: #{tpu_custom_call.1} parent=1 // pred_fallthru
      _
    // Predicated region
    $region6: #{tpu_custom_call.1} parent=1 // pred_check
      _
    $region7: #{tpu_custom_call.1} parent=1 // pred_check_branch
      %31 = sbr.rel (0) target = $region9
    $region8: #{tpu_custom_call.1} parent=1 // pred_region
      %s33 = ssub.s32 128, 128
      %34 = vsyncadd [#allocation3], %s33
      %s36 = sshll.u32 [#allocation6], 4
      %s37 = int_to_ptr.vmem [resolvable:$true] %s36
      %39 = dma.hbm_to_vmem [thread:$0]  %s1, 128, %s37, [#allocation3]
    $region9: #{tpu_custom_call.1} parent=1 // pred_fallthru
      _
    // Predicated region
    $region10: #{tpu_custom_call.1} parent=1 // pred_check
      _
    $region11: #{tpu_custom_call.1} parent=1 // pred_check_branch
      %41 = sbr.rel (0) target = $region13
    $region12: #{tpu_custom_call.1} parent=1 // pred_region
      %s43 = ssub.s32 128, 128
      %44 = vsyncadd [#allocation8], %s43
      %s46 = sshll.u32 [#allocation7], 4
      %s47 = int_to_ptr.vmem [resolvable:$true] %s46
      %49 = dma.hbm_to_vmem [thread:$0]  %s2, 128, %s47, [#allocation8]
    $region13: #{tpu_custom_call.1} parent=1 // pred_fallthru
      _
    // Predicated region
    $region14: #{tpu_custom_call.1} parent=1 // pred_check
      _
    $region15: #{tpu_custom_call.1} parent=1 // pred_check_branch
      %51 = sbr.rel (0) target = $region17
    $region16: #{tpu_custom_call.1} parent=1 // pred_region
      %s53 = ssub.s32 16, 16
      %54 = vsyncadd [#allocation8], %s53
      %s56 = sshll.u32 [#allocation9], 4
      %s57 = int_to_ptr.vmem [resolvable:$true] %s56
      %59 = dma.hbm_to_vmem [thread:$0]  %s3, 16, %s57, [#allocation8]
    $region17: #{tpu_custom_call.1} parent=1 // pred_fallthru
      _
    // Predicated region
    $region18: #{tpu_custom_call.1} parent=1 // pred_check
      _
    $region19: #{tpu_custom_call.1} parent=1 // pred_check_branch
      %61 = sbr.rel (0) target = $region21
    $region20: #{tpu_custom_call.1} parent=1 // pred_region
      %s63 = ssub.s32 16, 16
      %64 = vsyncadd [#allocation11], %s63
      %s66 = sshll.u32 [#allocation10], 4
      %s67 = int_to_ptr.vmem [resolvable:$true] %s66
      %69 = dma.hbm_to_vmem [thread:$0]  %s4, 16, %s67, [#allocation11]
    $region21: #{tpu_custom_call.1} parent=1 // pred_fallthru
      _
    // Predicated region
    $region22: #{tpu_custom_call.1} parent=1 // pred_check
      _
    $region23: #{tpu_custom_call.1} parent=1 // pred_check_branch
      %71 = sbr.rel (0) target = $region25
    $region24: #{tpu_custom_call.1} parent=1 // pred_region
      %s73 = ssub.s32 16, 16
      %74 = vsyncadd [#allocation11], %s73
      %s76 = sshll.u32 [#allocation12], 4
      %s77 = int_to_ptr.vmem [resolvable:$true] %s76
      %79 = dma.hbm_to_vmem [thread:$0]  %s5, 16, %s77, [#allocation11]
    $region25: #{tpu_custom_call.1} parent=1 // pred_fallthru
      _
    // Predicated region
    $region26: #{tpu_custom_call.1} parent=1 // pred_check
      _
    $region27: #{tpu_custom_call.1} parent=1 // pred_check_branch
      %81 = sbr.rel (0) target = $region29
    $region28: #{tpu_custom_call.1} parent=1 // pred_region
      %s83 = ssub.s32 16, 16
      %84 = vsyncadd [#allocation14], %s83
      %s86 = sshll.u32 [#allocation13], 4
      %s87 = int_to_ptr.vmem [resolvable:$true] %s86
      %89 = dma.hbm_to_vmem [thread:$0]  %s6, 16, %s87, [#allocation14]
    $region29: #{tpu_custom_call.1} parent=1 // pred_fallthru
      _
    // Predicated region
    $region30: #{tpu_custom_call.1} parent=1 // pred_check
      _
    $region31: #{tpu_custom_call.1} parent=1 // pred_check_branch
      %91 = sbr.rel (0) target = $region33
    $region32: #{tpu_custom_call.1} parent=1 // pred_region
      %s93 = ssub.s32 16, 16
      %94 = vsyncadd [#allocation14], %s93
      %s96 = sshll.u32 [#allocation15], 4
      %s97 = int_to_ptr.vmem [resolvable:$true] %s96
      %99 = dma.hbm_to_vmem [thread:$0]  %s7, 16, %s97, [#allocation14]
    $region33: #{tpu_custom_call.1} parent=1 // pred_fallthru
      _
    // Predicated region
    $region34: #{tpu_custom_call.1} parent=1 // pred_check
      _
    $region35: #{tpu_custom_call.1} parent=1 // pred_check_branch
      %101 = sbr.rel (0) target = $region37
    $region36: #{tpu_custom_call.1} parent=1 // pred_region
      %s103 = ssub.s32 256, 256
      %104 = vsyncadd [#allocation17], %s103
      %s105 = sshll.u32 [#allocation16], 4
      %s106 = int_to_ptr.vmem [resolvable:$true] %s105
      %111 = dma.hbm_to_vmem [thread:$0]  %s8, 256, %s106, [#allocation17], 128, 128, 8
    $region37: #{tpu_custom_call.1} parent=1 // pred_fallthru
      _
    // Predicated region
    $region38: #{tpu_custom_call.1} parent=1 // pred_check
      _
    $region39: #{tpu_custom_call.1} parent=1 // pred_check_branch
      %113 = sbr.rel (0) target = $region41
    $region40: #{tpu_custom_call.1} parent=1 // pred_region
      _
    $region41: #{tpu_custom_call.1} parent=1 // pred_fallthru
      _
    // Predicated region
    $region42: #{tpu_custom_call.1} parent=1 // pred_check
      _
    $region43: #{tpu_custom_call.1} parent=1 // pred_check_branch
      %115 = sbr.rel (0) target = $region45
    $region44: #{tpu_custom_call.1} parent=1 // pred_region
      %116 = dma.done [#allocation5], 16
    $region45: #{tpu_custom_call.1} parent=1 // pred_fallthru
      _
    // Predicated region
    $region46: #{tpu_custom_call.1} parent=1 // pred_check
      _
    $region47: #{tpu_custom_call.1} parent=1 // pred_check_branch
      %118 = sbr.rel (0) target = $region49
    $region48: #{tpu_custom_call.1} parent=1 // pred_region
      %119 = dma.done [#allocation3], 128
    $region49: #{tpu_custom_call.1} parent=1 // pred_fallthru
      _
    // Predicated region
    $region50: #{tpu_custom_call.1} parent=1 // pred_check
      _
    $region51: #{tpu_custom_call.1} parent=1 // pred_check_branch
      %121 = sbr.rel (0) target = $region53
    $region52: #{tpu_custom_call.1} parent=1 // pred_region
      %122 = dma.done [#allocation8], 128
    $region53: #{tpu_custom_call.1} parent=1 // pred_fallthru
      _
    // Predicated region
    $region54: #{tpu_custom_call.1} parent=1 // pred_check
      _
    $region55: #{tpu_custom_call.1} parent=1 // pred_check_branch
      %124 = sbr.rel (0) target = $region57
    $region56: #{tpu_custom_call.1} parent=1 // pred_region
      %125 = dma.done [#allocation8], 16
    $region57: #{tpu_custom_call.1} parent=1 // pred_fallthru
      _
    // Predicated region
    $region58: #{tpu_custom_call.1} parent=1 // pred_check
      _
    $region59: #{tpu_custom_call.1} parent=1 // pred_check_branch
      %127 = sbr.rel (0) target = $region61
    $region60: #{tpu_custom_call.1} parent=1 // pred_region
      %128 = dma.done [#allocation11], 16
    $region61: #{tpu_custom_call.1} parent=1 // pred_fallthru
      _
    // Predicated region
    $region62: #{tpu_custom_call.1} parent=1 // pred_check
      _
    $region63: #{tpu_custom_call.1} parent=1 // pred_check_branch
      %130 = sbr.rel (0) target = $region65
    $region64: #{tpu_custom_call.1} parent=1 // pred_region
      %131 = dma.done [#allocation11], 16
    $region65: #{tpu_custom_call.1} parent=1 // pred_fallthru
      _
    // Predicated region
    $region66: #{tpu_custom_call.1} parent=1 // pred_check
      _
    $region67: #{tpu_custom_call.1} parent=1 // pred_check_branch
      %133 = sbr.rel (0) target = $region69
    $region68: #{tpu_custom_call.1} parent=1 // pred_region
      %134 = dma.done [#allocation14], 16
    $region69: #{tpu_custom_call.1} parent=1 // pred_fallthru
      _
    // Predicated region
    $region70: #{tpu_custom_call.1} parent=1 // pred_check
      _
    $region71: #{tpu_custom_call.1} parent=1 // pred_check_branch
      %136 = sbr.rel (0) target = $region73
    $region72: #{tpu_custom_call.1} parent=1 // pred_region
      %137 = dma.done [#allocation14], 16
    $region73: #{tpu_custom_call.1} parent=1 // pred_fallthru
      _
    // Predicated region
    $region74: #{tpu_custom_call.1} parent=1 // pred_check
      _
    $region75: #{tpu_custom_call.1} parent=1 // pred_check_branch
      %139 = sbr.rel (0) target = $region77
    $region76: #{tpu_custom_call.1} parent=1 // pred_region
      %140 = dma.done [#allocation17], 256
    $region77: #{tpu_custom_call.1} parent=1 // pred_fallthru
      _
    %141 = sfence
    %s143 = sld [smem:[#allocation2]]
    %s144 = sld [smem:[#allocation2 + $0x1]]
    %s145 = sld [smem:[#allocation2 + $0x2]]
    %s146 = sld [smem:[#allocation2 + $0x3]]
    %s147 = sld [smem:[#allocation2 + $0x4]]
    %s148 = sld [smem:[#allocation2 + $0x5]]
    %s149 = sld [smem:[#allocation2 + $0x6]]
    %s150 = sld [smem:[#allocation2 + $0x7]]
    %v151 = vld [vmem:[#allocation7] sm:$0xff]
    %v152 = vld [vmem:[#allocation9] sm:$0x1]
    %v153 = vld [vmem:[#allocation6] sm:$0xff]
    %vm154 = vcmp.gt.f32.partialorder %v151, 0.0
    %v155 = vsel %vm154, %v153, -1e+30
    %vm156 = vcmask 523264
    %v157 = vsel %vm156, %v155, -inf
    %v158 = vrot.slane %v157, 4
    %v159 = vmax.f32 %v157, %v158
    %v160 = vrot.slane %v159, 2
    %v161 = vmax.f32 %v159, %v160
    %v162 = vrot.slane %v161, 1
    %v163 = vmax.f32 %v161, %v162
    %v164 = vsub.f32 0.0, %v153
    %v165 = vsel %vm154, %v164, -1e+30
    %v166 = vsel %vm156, %v165, -inf
    %v167 = vrot.slane %v166, 4
    %v168 = vmax.f32 %v166, %v167
    %v169 = vrot.slane %v168, 2
    %v170 = vmax.f32 %v168, %v169
    %v171 = vrot.slane %v170, 1
    %v172 = vmax.f32 %v170, %v171
    %v173 = vsub.f32 0.0, %v172
    %v174 = vsub.f32 %v153, %v163
    %v175 = vstv %s143
    %v176 = vmul.f32 %v174, %v175
    %v177 = vmin.f32 %v176, 0.0
    %v178 = vmul.f32 %v177, 1.442695
    %v179 = vpow.pop %v178
    %v180 = vmul.f32 %v179, %v151
    %v181 = vsub.f32 %v173, %v153
    %v182 = vmul.f32 %v181, %v175
    %v183 = vmin.f32 %v182, 0.0
    %v184 = vmul.f32 %v183, 1.442695
    %v185 = vpow.pop %v184
    %v186 = vmul.f32 %v185, %v151
    %v187 = vsel %vm156, %v180, 0.0
    %v188 = vrot.slane %v187, 4
    %v189 = vadd.f32 %v187, %v188
    %v190 = vrot.slane %v189, 2
    %v191 = vadd.f32 %v189, %v190
    %v192 = vrot.slane %v191, 1
    %v193 = vadd.f32 %v191, %v192
    %v194 = vsel %vm156, %v186, 0.0
    %v195 = vrot.slane %v194, 4
    %v196 = vadd.f32 %v194, %v195
    %v197 = vrot.slane %v196, 2
    %v198 = vadd.f32 %v196, %v197
    %v199 = vrot.slane %v198, 1
    %v200 = vadd.f32 %v198, %v199
    %v201 = vmul.f32 %v153, %v180
    %v202 = vsel %vm156, %v201, 0.0
    %v203 = vrot.slane %v202, 4
    %v204 = vadd.f32 %v202, %v203
    %v205 = vrot.slane %v204, 2
    %v206 = vadd.f32 %v204, %v205
    %v207 = vrot.slane %v206, 1
    %v208 = vadd.f32 %v206, %v207
    %v209 = vmul.f32 %v153, %v186
    %v210 = vsel %vm156, %v209, 0.0
    %v211 = vrot.slane %v210, 4
    %v212 = vadd.f32 %v210, %v211
    %v213 = vrot.slane %v212, 2
    %v214 = vadd.f32 %v212, %v213
    %v215 = vrot.slane %v214, 1
    %v216 = vadd.f32 %v214, %v215
    %vm217 = vcmp.gt.f32.partialorder %v193, 0.0
    %v218 = vsel %vm217, %v193, 1.0
    %v219 = vrcp.pop %v218
    %v220 = vmul.f32 %v208, %v219
    %v221 = vsel %vm217, %v200, 1.0
    %v222 = vrcp.pop %v221
    %v223 = vmul.f32 %v216, %v222
    %v224 = vsub.f32 %v220, %v223
    %v225 = vsel %vm217, %v224, 0.0
    %v226 = vmul.f32 %v225, %v152
    %vm227 = vcmask 516096
    %v228 = vsel %vm227, %v226, 0.0
    %229 = vadd.xlane.f32.xlu0 %v228
    %v230 = vpop.xlane.xlu0 %229
    %v231 = vrot.slane %v230, 4
    %v232 = vadd.f32 %v230, %v231
    %v233 = vrot.slane %v232, 2
    %v234 = vadd.f32 %v232, %v233
    %v235 = vrot.slane %v234, 1
    %v236 = vadd.f32 %v234, %v235
    %s237 = vtos %v236
    %v238 = vstv %s237
    %v239 = vlaneseq
    %v240 = vshrl.u32 %v239, 7
    %v241 = vadd.s32 %v240, 8
    %v242 = vcvt.s32.f32 %v240
    %v243 = vcvt.s32.f32 %v241
    %v244 = vstv %s144
    %v245 = vmul.f32 %v242, %v244
    %v246 = vmul.f32 %v243, %v244
    %v247 = vstv %s146
    %v248 = vadd.f32 %v247, %v245
    %v249 = vadd.f32 %v247, %v246
    %v250 = vstv %s145
    %v251 = vmul.f32 %v242, %v250
    %v252 = vmul.f32 %v243, %v250
    %v253 = vstv %s147
    %v254 = vadd.f32 %v253, %v251
    %v255 = vadd.f32 %v253, %v252
    %v256 = vld [vmem:[#allocation10] sm:$0x1]
    %v257 = vld [vmem:[#allocation12] sm:$0x1]
    %v258 = vld [vmem:[#allocation13] sm:$0x1]
    %v259 = vld [vmem:[#allocation15] sm:$0x1]
    %v260 = vadd.f32 %v256, %v258
    %v261 = vadd.f32 %v248, %v244
    %v262 = vadd.f32 %v249, %v244
    %v264 = vlaneseq
    %v265 = vshrl.u32 %v264, 7
    %v266 = vsub.s32 0, %v265
    %v267 = vrot.slane %v260, %v266
    %v269 = vmin.f32 %v267, %v261
    %v270 = vmin.f32 %v267, %v262
    %v272 = vlaneseq
    %v273 = vshrl.u32 %v272, 7
    %v274 = vsub.s32 0, %v273
    %v275 = vrot.slane %v256, %v274
    %v277 = vmax.f32 %v275, %v248
    %v278 = vmax.f32 %v275, %v249
    %v279 = vsub.f32 %v269, %v277
    %v280 = vsub.f32 %v270, %v278
    %v281 = vmax.f32 %v279, 0.0
    %v282 = vmax.f32 %v280, 0.0
    %v283 = vadd.f32 %v257, %v259
    %v284 = vadd.f32 %v254, %v250
    %v285 = vadd.f32 %v255, %v250
    %v287 = vlaneseq
    %v288 = vshrl.u32 %v287, 7
    %v289 = vsub.s32 0, %v288
    %v290 = vrot.slane %v283, %v289
    %v292 = vmin.f32 %v290, %v284
    %v293 = vmin.f32 %v290, %v285
    %v295 = vlaneseq
    %v296 = vshrl.u32 %v295, 7
    %v297 = vsub.s32 0, %v296
    %v298 = vrot.slane %v257, %v297
    %v300 = vmax.f32 %v298, %v254
    %v301 = vmax.f32 %v298, %v255
    %v302 = vsub.f32 %v292, %v300
    %v303 = vsub.f32 %v293, %v301
    %v304 = vmax.f32 %v302, 0.0
    %v305 = vmax.f32 %v303, 0.0
    %v306 = vpack.c.bf16 %v282, %v281
    %307 = vxpose.xlu0.b32.start [1/16] %v304, 128
    %308 = vxpose.xlu0.b32.cont [2/16] %v305, 128
    %309 = vxpose.xlu0.b32.cont [3/16] 0.0, 128
    %310 = vxpose.xlu0.b32.cont [4/16] 0.0, 128
    %311 = vxpose.xlu0.b32.cont [5/16] 0.0, 128
    %312 = vxpose.xlu0.b32.cont [6/16] 0.0, 128
    %313 = vxpose.xlu0.b32.cont [7/16] 0.0, 128
    %314 = vxpose.xlu0.b32.cont [8/16] 0.0, 128
    %315 = vxpose.xlu0.b32.cont [9/16] 0.0, 128
    %316 = vxpose.xlu0.b32.cont [10/16] 0.0, 128
    %317 = vxpose.xlu0.b32.cont [11/16] 0.0, 128
    %318 = vxpose.xlu0.b32.cont [12/16] 0.0, 128
    %319 = vxpose.xlu0.b32.cont [13/16] 0.0, 128
    %320 = vxpose.xlu0.b32.cont [14/16] 0.0, 128
    %321 = vxpose.xlu0.b32.cont [15/16] 0.0, 128
    %322 = vxpose.xlu0.b32.end [16/16] 0.0, 128
    %v323 = vpop.trf.xlu0
    %v324 = vpop.trf.xlu0
    %v325 = vpop.trf.xlu0
    %v326 = vpop.trf.xlu0
    %v327 = vpop.trf.xlu0
    %v328 = vpop.trf.xlu0
    %v329 = vpop.trf.xlu0
    %v330 = vpop.trf.xlu0
    %v331 = vpop.trf.xlu0
    %v332 = vpop.trf.xlu0
    %v333 = vpop.trf.xlu0
    %v334 = vpop.trf.xlu0
    %v335 = vpop.trf.xlu0
    %v336 = vpop.trf.xlu0
    %v337 = vpop.trf.xlu0
    %v338 = vpop.trf.xlu0
    %v339 = vpack.c.bf16 %v324, %v323
    %v340 = vpack.c.bf16 %v326, %v325
    %v341 = vpack.c.bf16 %v328, %v327
    %v342 = vpack.c.bf16 %v330, %v329
    %v344 = vsel %vm156, %v306, 0
    %346 = vmatprep.subr.bf16.mxu0 0
    %347 = vmatpush1.bf16.msra.mxu0 0
    %348 = vmatprep.subr.bf16.mxu0 0
    %349 = vmatpush1.bf16.msra.mxu0 0
    %350 = vmatprep.subr.bf16.mxu0 0
    %351 = vmatpush1.bf16.msra.mxu0 0
    %352 = vmatprep.subr.bf16.mxu0 0
    %353 = vmatpush1.bf16.msra.mxu0 0
    %354 = vmatprep.subr.bf16.mxu0 0
    %355 = vmatpush1.bf16.msra.mxu0 %v342
    %356 = vmatprep.subr.bf16.mxu0 0
    %357 = vmatpush1.bf16.msra.mxu0 %v341
    %358 = vmatprep.subr.bf16.mxu0 0
    %359 = vmatpush1.bf16.msra.mxu0 %v340
    %360 = vmatprep.subr.bf16.mxu0 0
    %361 = vmatpush1.bf16.msra.mxu0 %v339
    %362 = vmatprep.subr.bf16.mxu0 0
    %363 = vmatpush2.bf16.msra.mxu0 0
    %364 = vmatprep.subr.bf16.mxu0 0
    %365 = vmatpush2.bf16.msra.mxu0 0
    %366 = vmatprep.subr.bf16.mxu0 0
    %367 = vmatpush2.bf16.msra.mxu0 0
    %368 = vmatprep.subr.bf16.mxu0 0
    %369 = vmatpush2.bf16.msra.mxu0 0
    %370 = vmatprep.subr.bf16.mxu0 0
    %371 = vmatpush2.bf16.msra.mxu0 0
    %372 = vmatprep.subr.bf16.mxu0 0
    %373 = vmatpush2.bf16.msra.mxu0 0
    %374 = vmatprep.subr.bf16.mxu0 0
    %375 = vmatpush2.bf16.msra.mxu0 0
    %376 = vmatprep.subr.bf16.mxu0 0
    %377 = vmatpush2.bf16.msra.mxu0 0
    %378 = vmatprep.mubr.bf16.mxu0 0
    %379 = vmatmul.mubr.bf16.gmra.mxu0 %v344
    %v380 = vpop.f32.mrf.mxu0
    %v381 = vadd.f32 0.0, %v380
    %v382 = vpop.f32.mrf.mxu0
    %v383 = vpop.f32.mrf.mxu0
    %v384 = vadd.f32 0.0, %v383
    %v385 = vpop.f32.mrf.mxu0
    %386 = vdwg.mxu0
    %v387 = vstv %s148
    %v388 = vmul.f32 %v381, %v387
    %v389 = vmul.f32 %v384, %v387
    %v390 = vstv %s149
    %v391 = vsub.f32 %v388, %v390
    %v392 = vsub.f32 %v389, %v390
    %v393 = vld [vmem:[#allocation16] sm:$0xff]
    %v394 = vld [vmem:[#allocation16 + $0x8] sm:$0xff]
    %vm395 = vcmask 130048
    %v397 = vsel %vm395, %v393, 0
    %v400 = vsel %vm395, %v394, 0
    %402 = vmatprep.subr.mxu0 0.0
    %403 = vmatpush1.msra.mxu0 0.0
    %404 = vmatprep.subr.mxu0 0.0
    %405 = vmatpush1.msra.mxu0 0.0
    %406 = vmatprep.subr.mxu0 0.0
    %407 = vmatpush1.msra.mxu0 0.0
    %408 = vmatprep.subr.mxu0 0.0
    %409 = vmatpush1.msra.mxu0 0.0
    %410 = vmatprep.subr.mxu0 0.0
    %411 = vmatpush1.msra.mxu0 0.0
    %412 = vmatprep.subr.mxu0 0.0
    %413 = vmatpush1.msra.mxu0 0.0
    %414 = vmatprep.subr.mxu0 0.0
    %415 = vmatpush1.msra.mxu0 0.0
    %416 = vmatprep.subr.mxu0 0.0
    %417 = vmatpush1.msra.mxu0 0.0
    %418 = vmatprep.subr.mxu0 0.0
    %419 = vmatpush1.msra.mxu0 0.0
    %420 = vmatprep.subr.mxu0 0.0
    %421 = vmatpush1.msra.mxu0 0.0
    %422 = vmatprep.subr.mxu0 0.0
    %423 = vmatpush1.msra.mxu0 0.0
    %424 = vmatprep.subr.mxu0 0.0
    %425 = vmatpush1.msra.mxu0 0.0
    %426 = vmatprep.subr.mxu0 0.0
    %427 = vmatpush1.msra.mxu0 0.0
    %428 = vmatprep.subr.mxu0 0.0
    %429 = vmatpush1.msra.mxu0 0.0
    %430 = vmatprep.subr.mxu0 0.0
    %431 = vmatpush1.msra.mxu0 %v392
    %432 = vmatprep.subr.mxu0 0.0
    %433 = vmatpush1.msra.mxu0 %v391
    %434 = vmatprep.subr.mxu0 0.0
    %435 = vmatpush2.msra.mxu0 0.0
    %436 = vmatprep.subr.mxu0 0.0
    %437 = vmatpush2.msra.mxu0 0.0
    %438 = vmatprep.subr.mxu0 0.0
    %439 = vmatpush2.msra.mxu0 0.0
    %440 = vmatprep.subr.mxu0 0.0
    %441 = vmatpush2.msra.mxu0 0.0
    %442 = vmatprep.subr.mxu0 0.0
    %443 = vmatpush2.msra.mxu0 0.0
    %444 = vmatprep.subr.mxu0 0.0
    %445 = vmatpush2.msra.mxu0 0.0
    %446 = vmatprep.subr.mxu0 0.0
    %447 = vmatpush2.msra.mxu0 0.0
    %448 = vmatprep.subr.mxu0 0.0
    %449 = vmatpush2.msra.mxu0 0.0
    %450 = vmatprep.subr.mxu0 0.0
    %451 = vmatpush2.msra.mxu0 0.0
    %452 = vmatprep.subr.mxu0 0.0
    %453 = vmatpush2.msra.mxu0 0.0
    %454 = vmatprep.subr.mxu0 0.0
    %455 = vmatpush2.msra.mxu0 0.0
    %456 = vmatprep.subr.mxu0 0.0
    %457 = vmatpush2.msra.mxu0 0.0
    %458 = vmatprep.subr.mxu0 0.0
    %459 = vmatpush2.msra.mxu0 0.0
    %460 = vmatprep.subr.mxu0 0.0
    %461 = vmatpush2.msra.mxu0 0.0
    %462 = vmatprep.subr.mxu0 0.0
    %463 = vmatpush2.msra.mxu0 0.0
    %464 = vmatprep.subr.mxu0 0.0
    %465 = vmatpush2.msra.mxu0 0.0
    %466 = vmatprep.mubr.f32.mxu0 0.0
    %467 = vmatmul.mubr.f32.gmra.mxu0 %v397
    %v468 = vpop.f32.mrf.mxu0
    %v469 = vadd.f32 0.0, %v468
    %v470 = vpop.f32.mrf.mxu0
    %471 = vmatprep.mubr.f32.mxu0 0.0
    %472 = vmatmul.mubr.f32.gmra.mxu0 %v400
    %v473 = vpop.f32.mrf.mxu0
    %v474 = vadd.f32 0.0, %v473
    %v475 = vpop.f32.mrf.mxu0
    %476 = vdwg.mxu0
    %v478 = vsel %vm395, %v469, 0
    %v481 = vsel %vm395, %v474, 0
    %483 = vmatprep.subr.mxu0 0.0
    %484 = vmatpush1.xpose.msra.mxu0 0.0
    %485 = vmatprep.subr.mxu0 0.0
    %486 = vmatpush1.xpose.msra.mxu0 0.0
    %487 = vmatprep.subr.mxu0 0.0
    %488 = vmatpush1.xpose.msra.mxu0 0.0
    %489 = vmatprep.subr.mxu0 0.0
    %490 = vmatpush1.xpose.msra.mxu0 0.0
    %491 = vmatprep.subr.mxu0 0.0
    %492 = vmatpush1.xpose.msra.mxu0 0.0
    %493 = vmatprep.subr.mxu0 0.0
    %494 = vmatpush1.xpose.msra.mxu0 0.0
    %495 = vmatprep.subr.mxu0 0.0
    %496 = vmatpush1.xpose.msra.mxu0 0.0
    %497 = vmatprep.subr.mxu0 0.0
    %498 = vmatpush1.xpose.msra.mxu0 0.0
    %499 = vmatprep.subr.mxu0 0.0
    %500 = vmatpush1.xpose.msra.mxu0 0.0
    %501 = vmatprep.subr.mxu0 0.0
    %502 = vmatpush1.xpose.msra.mxu0 0.0
    %503 = vmatprep.subr.mxu0 0.0
    %504 = vmatpush1.xpose.msra.mxu0 0.0
    %505 = vmatprep.subr.mxu0 0.0
    %506 = vmatpush1.xpose.msra.mxu0 0.0
    %507 = vmatprep.subr.mxu0 0.0
    %508 = vmatpush1.xpose.msra.mxu0 0.0
    %509 = vmatprep.subr.mxu0 0.0
    %510 = vmatpush1.xpose.msra.mxu0 0.0
    %511 = vmatprep.subr.mxu0 0.0
    %512 = vmatpush1.xpose.msra.mxu0 %v400
    %513 = vmatprep.subr.mxu0 0.0
    %514 = vmatpush1.xpose.msra.mxu0 %v397
    %515 = vmatprep.subr.mxu0 0.0
    %516 = vmatpush2.xpose.msra.mxu0 0.0
    %517 = vmatprep.subr.mxu0 0.0
    %518 = vmatpush2.xpose.msra.mxu0 0.0
    %519 = vmatprep.subr.mxu0 0.0
    %520 = vmatpush2.xpose.msra.mxu0 0.0
    %521 = vmatprep.subr.mxu0 0.0
    %522 = vmatpush2.xpose.msra.mxu0 0.0
    %523 = vmatprep.subr.mxu0 0.0
    %524 = vmatpush2.xpose.msra.mxu0 0.0
    %525 = vmatprep.subr.mxu0 0.0
    %526 = vmatpush2.xpose.msra.mxu0 0.0
    %527 = vmatprep.subr.mxu0 0.0
    %528 = vmatpush2.xpose.msra.mxu0 0.0
    %529 = vmatprep.subr.mxu0 0.0
    %530 = vmatpush2.xpose.msra.mxu0 0.0
    %531 = vmatprep.subr.mxu0 0.0
    %532 = vmatpush2.xpose.msra.mxu0 0.0
    %533 = vmatprep.subr.mxu0 0.0
    %534 = vmatpush2.xpose.msra.mxu0 0.0
    %535 = vmatprep.subr.mxu0 0.0
    %536 = vmatpush2.xpose.msra.mxu0 0.0
    %537 = vmatprep.subr.mxu0 0.0
    %538 = vmatpush2.xpose.msra.mxu0 0.0
    %539 = vmatprep.subr.mxu0 0.0
    %540 = vmatpush2.xpose.msra.mxu0 0.0
    %541 = vmatprep.subr.mxu0 0.0
    %542 = vmatpush2.xpose.msra.mxu0 0.0
    %543 = vmatprep.subr.mxu0 0.0
    %544 = vmatpush2.xpose.msra.mxu0 0.0
    %545 = vmatprep.subr.mxu0 0.0
    %546 = vmatpush2.xpose.msra.mxu0 0.0
    %547 = vmatprep.mubr.f32.mxu0 0.0
    %548 = vmatmul.mubr.f32.gmra.mxu0 %v478
    %v549 = vpop.f32.mrf.mxu0
    %v550 = vadd.f32 0.0, %v549
    %v551 = vpop.f32.mrf.mxu0
    %552 = vmatprep.mubr.f32.mxu0 0.0
    %553 = vmatmul.mubr.f32.gmra.mxu0 %v481
    %v554 = vpop.f32.mrf.mxu0
    %v555 = vadd.f32 0.0, %v554
    %v556 = vpop.f32.mrf.mxu0
    %557 = vdwg.mxu0
    %v558 = vmul.f32 %v550, %v550
    %v559 = vmul.f32 %v555, %v555
    %v560 = vld [vmem:[%s9] sm:$0xff]
    %v561 = vld [vmem:[%s9 + $0x8] sm:$0xff]
    %v562 = vmul.f32 %v558, %v560
    %v563 = vmul.f32 %v559, %v561
    %v564 = vsel %vm395, %v562, 0.0
    %v565 = vsel %vm395, %v563, 0.0
    %v566 = vadd.f32 %v564, %v565
    %567 = vadd.xlane.f32.xlu0 %v566
    %v568 = vpop.xlane.xlu0 %567
    %v569 = vrot.slane %v568, 4
    %v570 = vadd.f32 %v568, %v569
    %v571 = vrot.slane %v570, 2
    %v572 = vadd.f32 %v570, %v571
    %v573 = vrot.slane %v572, 1
    %v574 = vadd.f32 %v572, %v573
    %s575 = vtos %v574
    %v576 = vstv %s575
    %v577 = vmul.f32 %v576, 0.5
    %v578 = vstv %s150
    %v579 = vmul.f32 %v578, %v577
    %v580 = vadd.f32 %v238, %v579
    %v581 = vlaneseq
    %v582 = vand.u32 %v581, 127
    %vm583 = vcmp.eq.s32.totalorder %v582, 0
    %vm584 = vcmp.eq.s32.totalorder %v582, 1
    %vm585 = vcmp.eq.s32.totalorder %v582, 2
    %v586 = vsel %vm585, %v577, 0.0
    %v587 = vsel %vm584, %v238, %v586
    %v588 = vsel %vm583, %v580, %v587
    %589 = vst [vmem:[#allocation18] sm:$0x1] %v588
    // Predicated region
    $region78: #{tpu_custom_call.1} parent=1 // pred_check
      _
    $region79: #{tpu_custom_call.1} parent=1 // pred_check_branch
      %591 = sbr.rel (0) target = $region81
    $region80: #{tpu_custom_call.1} parent=1 // pred_region
      %s593 = ssub.s32 16, 16
      %594 = vsyncadd [#allocation4], %s593
      %s596 = sshll.u32 [#allocation18], 4
      %s597 = int_to_ptr.vmem [resolvable:$true] %s596
      %599 = dma.vmem_to_hbm [thread:$0]  %s597, 16, %s10, [#allocation4]
    $region81: #{tpu_custom_call.1} parent=1 // pred_fallthru
      _
    // Predicated region
    $region82: #{tpu_custom_call.1} parent=1 // pred_check
      _
    $region83: #{tpu_custom_call.1} parent=1 // pred_check_branch
      %601 = sbr.rel (0) target = $region85
    $region84: #{tpu_custom_call.1} parent=1 // pred_region
      %602 = dma.done [#allocation4], 16
    $region85: #{tpu_custom_call.1} parent=1 // pred_fallthru
      _
    %603 = vsyncpa [#allocation3], 1
    %604 = vsyncpa [#allocation8], 1
    %605 = vsyncpa [#allocation11], 1
    %606 = vsyncpa [#allocation14], 1
    %607 = vsyncpa [#allocation17], 1
    %608 = vsyncpa [#allocation4], 1
    %609 = vsyncpa [#allocation5], 1

</llo_original>
